<compile_context>
chip_gen: v7x
topology: tpu7x:2x2x1
jax: 0.10.0
libtpu: 0.0.40
codegen_flags: <defaults>
</compile_context>

<pallas_src>
import jax
import jax.numpy as jnp
from jax import lax
from jax.experimental import pallas as pl
from jax.experimental.pallas import tpu as pltpu


def _make_kernel(B, H, use_mask):
    """One kernel invocation handling every (batch, head) tile at once."""
    BH = B * H

    def kernel(*refs):
        if use_mask:
            q_ref, k_ref, v_ref, m_ref, o_ref = refs
        else:
            q_ref, k_ref, v_ref, o_ref = refs

        # q: (H, SQ, E) is broadcast over the batch dim of k/v (torch.matmul
        # broadcasting), then merged with H into one leading "batch" axis so
        # everything below is a single batched contraction / softmax / store.
        q = q_ref[...]                                         # (H, SQ, E)
        SQ, E = q.shape[1], q.shape[2]
        qb = jnp.broadcast_to(q[None], (B, H, SQ, E)).reshape(BH, SQ, E)

        k = k_ref[...]                                         # (BH, SK, E)
        v = v_ref[...]                                         # (BH, SK, D)

        # s = q @ k^T, transpose folded into the contraction (batch dim = BH)
        s = lax.dot_general(
            qb, k,
            dimension_numbers=(((2,), (2,)), ((0,), (0,))),
            preferred_element_type=jnp.float32)                # (BH, SQ, SK)

        # scale_factor = inv_scale_factor = 1.0 -> no-op (omitted)

        # numerically-stable softmax; the 1/denom normalization is deferred
        # past the PV matmul (valid: denom is a per-row scalar).
        s = s - jnp.max(s, axis=-1, keepdims=True)
        e = jnp.exp(s)
        denom = jnp.sum(e, axis=-1, keepdims=True)             # (BH, SQ, 1)

        if use_mask:
            # keep-mask already scaled by 1/(1-p) in the wrapper
            e = e * m_ref[...]

        o = lax.dot_general(
            e, v,
            dimension_numbers=(((2,), (1,)), ((0,), (0,))),
            preferred_element_type=jnp.float32)                # (BH, SQ, D)
        o = o * pl.reciprocal(denom, approx=False)
        o_ref[...] = o.astype(o_ref.dtype)

    return kernel


def sdpa_dropout(q1, k2, v3, dropout_p, key=None):
    """q1: (1, H, SQ, E), k2: (B, H, SK, E), v3: (B, H, SK, D) -> (B, H, SQ, D)."""
    _, H, SQ, E = q1.shape
    B, _, SK, _ = k2.shape
    D = v3.shape[-1]
    BH = B * H

    dropout_p = float(dropout_p)

    # p >= 1 (the module's default): dropout zeroes everything.  Skip the
    # pallas_call entirely -- no launch, no DMAs, no grid-step overhead.
    if dropout_p >= 1.0:
        return jnp.zeros((B, H, SQ, D), dtype=jnp.float32)

    use_mask = dropout_p > 0.0

    # Leading-dim merges only (last two dims untouched -> no (8,128) relayout).
    q = q1.reshape(H, SQ, E)
    k = k2.reshape(BH, SK, E)
    v = v3.reshape(BH, SK, D)

    inputs = [q, k, v]
    in_specs = [
        pl.BlockSpec((H, SQ, E), lambda i: (0, 0, 0)),
        pl.BlockSpec((BH, SK, E), lambda i: (0, 0, 0)),
        pl.BlockSpec((BH, SK, D), lambda i: (0, 0, 0)),
    ]

    if use_mask:
        # TODO(synk): torch's dropout RNG stream is not reproducible here; we
        # use an equivalent Bernoulli keep-mask generated host-side with
        # jax.random (deterministic given `key`) and passed in as an input.
        keep_prob = 1.0 - dropout_p
        if key is None:
            key = jax.random.PRNGKey(0)
        keep = jax.random.bernoulli(key, keep_prob, (BH, SQ, SK))
        mask = keep.astype(jnp.float32) * jnp.float32(1.0 / keep_prob)
        inputs.append(mask)
        in_specs.append(pl.BlockSpec((BH, SQ, SK), lambda i: (0, 0, 0)))

    kernel = _make_kernel(B, H, use_mask)

    out = pl.pallas_call(
        kernel,
        out_shape=jax.ShapeDtypeStruct((BH, SQ, D), jnp.float32),
        grid_spec=pltpu.PrefetchScalarGridSpec(
            num_scalar_prefetch=0,
            grid=(1,),                   # whole problem fits in VMEM in one step
            in_specs=in_specs,
            out_specs=pl.BlockSpec((BH, SQ, D), lambda i: (0, 0, 0)),
        ),
        compiler_params=pltpu.CompilerParams(dimension_semantics=("arbitrary",)),
    )(*inputs)
    return out.reshape(B, H, SQ, D)


if __name__ == "__main__":
    key = jax.random.PRNGKey(0)
    kq, kk, kv, kd = jax.random.split(key, 4)

    # small, shape-consistent inputs (see layout note above)
    q1 = jax.random.normal(kq, (1, 3, 8, 8), dtype=jnp.float32)
    k2 = jax.random.normal(kk, (2, 3, 6, 8), dtype=jnp.float32)
    v3 = jax.random.normal(kv, (2, 3, 6, 6), dtype=jnp.float32)
    dropout_p1 = 1.0  # as in the original module

    B, H, SQ, SK, D = 2, 3, 8, 6, 6

    # p = 1 (original config): dropout zeroes everything -> exactly-zero output
    out = jax.block_until_ready(sdpa_dropout(q1, k2, v3, dropout_p1))
    assert out.shape == (B, H, SQ, D)
    assert bool(jnp.all(out == 0.0))

    # p = 0: pure attention path (through the Pallas kernel), vs JAX reference
    out_p0 = jax.block_until_ready(sdpa_dropout(q1, k2, v3, 0.0))
    qk = jnp.einsum("xhqe,bhke->bhqk", q1, k2)
    sm = jax.nn.softmax(qk, axis=-1)
    ref_p0 = jnp.einsum("bhqk,bhkd->bhqd", sm, v3)
    assert bool(jnp.allclose(out_p0, ref_p0, atol=1e-4, rtol=1e-4))

    # 0 < p < 1: masked path, reference uses the SAME mask the wrapper builds
    out_p5 = jax.block_until_ready(sdpa_dropout(q1, k2, v3, 0.5, key=kd))
    keep = jax.random.bernoulli(kd, 0.5, (B * H, SQ, SK)).astype(jnp.float32) / 0.5
    ref_p5 = jnp.einsum("bhqk,bhkd->bhqd", sm * keep.reshape(B, H, SQ, SK), v3)
    assert bool(jnp.all(jnp.isfinite(out_p5)))
    assert bool(jnp.allclose(out_p5, ref_p5, atol=1e-4, rtol=1e-4))

    print("KERNEL_OK")
</pallas_src>

<mosaic_0001>
module attributes {stable_mosaic.version = 11 : i64} {
  func.func @kernel(%arg0: i32, %arg1: memref<3x8x8xf32, #tpu.memory_space<vmem>>, %arg2: memref<6x6x8xf32, #tpu.memory_space<vmem>>, %arg3: memref<6x6x6xf32, #tpu.memory_space<vmem>>, %arg4: memref<6x8x6xf32, #tpu.memory_space<vmem>>) attributes {dimension_semantics = [#tpu.dimension_semantics<arbitrary>], iteration_bounds = array<i64: 1>, scalar_prefetch = 0 : i64, scratch_operands = 0 : i64, tpu.core_type = #tpu.core_type<tc>, window_params = [{pipeline_mode = #tpu.pipeline_mode<synchronous>, transform_indices = @transform_0, window_bounds = array<i64: 3, 8, 8>}, {pipeline_mode = #tpu.pipeline_mode<synchronous>, transform_indices = @transform_1, window_bounds = array<i64: 6, 6, 8>}, {pipeline_mode = #tpu.pipeline_mode<synchronous>, transform_indices = @transform_2, window_bounds = array<i64: 6, 6, 6>}, {pipeline_mode = #tpu.pipeline_mode<synchronous>, transform_indices = @transform_3, window_bounds = array<i64: 6, 8, 6>}]} {
    %c0 = arith.constant 0 : index
    %c0_0 = arith.constant 0 : index
    %c0_1 = arith.constant 0 : index
    %0 = vector.load %arg1[%c0, %c0_0, %c0_1] : memref<3x8x8xf32, #tpu.memory_space<vmem>>, vector<3x8x8xf32>
    %1 = vector.shape_cast %0 : vector<3x8x8xf32> to vector<1x3x8x8xf32>
    %2 = vector.shape_cast %1 : vector<1x3x8x8xf32> to vector<1x3x8x8xf32>
    %3 = vector.broadcast %2 : vector<1x3x8x8xf32> to vector<2x3x8x8xf32>
    %4 = vector.shape_cast %3 : vector<2x3x8x8xf32> to vector<6x8x8xf32>
    %c0_2 = arith.constant 0 : index
    %c0_3 = arith.constant 0 : index
    %c0_4 = arith.constant 0 : index
    %5 = vector.load %arg2[%c0_2, %c0_3, %c0_4] : memref<6x6x8xf32, #tpu.memory_space<vmem>>, vector<6x6x8xf32>
    %c0_5 = arith.constant 0 : index
    %c0_6 = arith.constant 0 : index
    %c0_7 = arith.constant 0 : index
    %6 = vector.load %arg3[%c0_5, %c0_6, %c0_7] : memref<6x6x6xf32, #tpu.memory_space<vmem>>, vector<6x6x6xf32>
    %cst = arith.constant dense<0.000000e+00> : vector<6x8x6xf32>
    %7 = tpu.matmul %4, %5, %cst {dimension_numbers = #tpu.dot_dimension_numbers<[2], [2], [1], [1], [0, 0, 0, 1, 1, 1], [0], [0]>} : vector<6x8x8xf32>, vector<6x6x8xf32>, vector<6x8x6xf32> -> vector<6x8x6xf32>
    %cst_8 = arith.constant dense<0xFF800000> : vector<6x8xf32>
    %8 = vector.multi_reduction <maximumf>, %7, %cst_8 [2] : vector<6x8x6xf32> to vector<6x8xf32>
    %9 = vector.shape_cast %8 : vector<6x8xf32> to vector<6x8x1xf32>
    %10 = vector.broadcast %9 : vector<6x8x1xf32> to vector<6x8x6xf32>
    %11 = arith.subf %7, %10 : vector<6x8x6xf32>
    %12 = math.exp %11 : vector<6x8x6xf32>
    %cst_9 = arith.constant dense<0.000000e+00> : vector<6x8xf32>
    %13 = vector.multi_reduction <add>, %12, %cst_9 [2] : vector<6x8x6xf32> to vector<6x8xf32>
    %14 = vector.shape_cast %13 : vector<6x8xf32> to vector<6x8x1xf32>
    %cst_10 = arith.constant dense<0.000000e+00> : vector<6x8x6xf32>
    %15 = tpu.matmul %12, %6, %cst_10 {dimension_numbers = #tpu.dot_dimension_numbers<[2], [1], [1], [2], [0, 0, 0, 1, 1, 2], [0], [0]>} : vector<6x8x6xf32>, vector<6x6x6xf32>, vector<6x8x6xf32> -> vector<6x8x6xf32>
    %16 = tpu.reciprocal %14 : vector<6x8x1xf32> -> vector<6x8x1xf32>
    %17 = vector.broadcast %16 : vector<6x8x1xf32> to vector<6x8x6xf32>
    %18 = arith.mulf %15, %17 : vector<6x8x6xf32>
    %c0_11 = arith.constant 0 : index
    %c0_12 = arith.constant 0 : index
    %c0_13 = arith.constant 0 : index
    %19 = vector.load %arg4[%c0_11, %c0_12, %c0_13] : memref<6x8x6xf32, #tpu.memory_space<vmem>>, vector<6x8x6xf32>
    tpu.vector_store %arg4[%c0_11, %c0_12, %c0_13], %18 {strides = array<i32>} : memref<6x8x6xf32, #tpu.memory_space<vmem>>, vector<6x8x6xf32>,
    return
  }
  func.func @transform_0(%arg0: i32) -> (i32, i32, i32) {
    %c0_i32 = arith.constant 0 : i32
    %c0_i32_0 = arith.constant 0 : i32
    %c0_i32_1 = arith.constant 0 : i32
    %c0_i32_2 = arith.constant 0 : i32
    return %c0_i32, %c0_i32_0, %c0_i32_1 : i32, i32, i32
  }
  func.func @transform_1(%arg0: i32) -> (i32, i32, i32) {
    %c0_i32 = arith.constant 0 : i32
    %c0_i32_0 = arith.constant 0 : i32
    %c0_i32_1 = arith.constant 0 : i32
    %c0_i32_2 = arith.constant 0 : i32
    return %c0_i32, %c0_i32_0, %c0_i32_1 : i32, i32, i32
  }
  func.func @transform_2(%arg0: i32) -> (i32, i32, i32) {
    %c0_i32 = arith.constant 0 : i32
    %c0_i32_0 = arith.constant 0 : i32
    %c0_i32_1 = arith.constant 0 : i32
    %c0_i32_2 = arith.constant 0 : i32
    return %c0_i32, %c0_i32_0, %c0_i32_1 : i32, i32, i32
  }
  func.func @transform_3(%arg0: i32) -> (i32, i32, i32) {
    %c0_i32 = arith.constant 0 : i32
    %c0_i32_0 = arith.constant 0 : i32
    %c0_i32_1 = arith.constant 0 : i32
    %c0_i32_2 = arith.constant 0 : i32
    return %c0_i32, %c0_i32_0, %c0_i32_1 : i32, i32, i32
  }
}

</mosaic_0001>

<llo_original>
// kernel: tpu_custom_call.1
$region0: #{tpu_custom_call.1}
  #allocation0 [shape = 'u32[]', space=smem, size = 0x4, offset = 0x4, fixed_abs, tag = 'smem constant byte address 0x4 - core index']
  #allocation1 [shape = 'u32[144,128]{1,0:T(1,128)}', space=vmem, size = 0x12000, scoped, tag = 'internal scratch']
  %s0 = inlined_call_operand.hbm [shape: f32[3,8,8], index: 0, kind: input, shape index: {}]
  %s1 = inlined_call_operand.hbm [shape: f32[6,6,8], index: 1, kind: input, shape index: {}]
  %s2 = inlined_call_operand.hbm [shape: f32[6,6,6], index: 2, kind: input, shape index: {}]
  %s3 = inlined_call_operand.hbm [shape: f32[6,8,6], index: 3, kind: output, shape index: {}]
  %s4 = sld [smem:[#allocation0]]
  $region34: #{tpu_custom_call.1} parent=0
    _
  %s6 = ssub.s32 1, %s4
  %s7 = scalar_select 0, %s6, %s4
  $region1: #{tpu_custom_call.1} parent=0
    #allocation2 [shape = 'u8[12288]{0}', space=vmem, size = 0x3000, scoped, tag = 'input window, operand 0, single buffered']
    #allocation3 [shape = 's32[1]{0}', space=sflag, size = 0x4, scoped, tag = 'scoped memory for tpu_custom_call.1']
    #allocation4 [shape = 's32[1]{0}', space=sflag, size = 0x4, scoped, tag = 'scoped memory for tpu_custom_call.1']
    #allocation5 [shape = 'u8[24576]{0}', space=vmem, size = 0x6000, scoped, tag = 'input window, operand 1, single buffered']
    #allocation6 [shape = 's32[1]{0}', space=sflag, size = 0x4, scoped, tag = 'scoped memory for tpu_custom_call.1']
    #allocation7 [shape = 'u8[24576]{0}', space=vmem, size = 0x6000, scoped, tag = 'input window, operand 2, single buffered']
    #allocation8 [shape = 'u8[24576]{0}', space=vmem, size = 0x6000, scoped, tag = 'output window, operand 0, single buffered']
    %8 = vsyncpa [#allocation3], 0
    %9 = vsyncpa [#allocation6], 0
    %10 = vsyncpa [#allocation4], 0
    // Predicated region
    $region2: #{tpu_custom_call.1} parent=1 // pred_check
      _
    $region3: #{tpu_custom_call.1} parent=1 // pred_check_branch
      %12 = sbr.rel (0) target = $region5
    $region4: #{tpu_custom_call.1} parent=1 // pred_region
      %s14 = ssub.s32 384, 384
      %15 = vsyncadd [#allocation3], %s14
      %s16 = sshll.u32 [#allocation2], 4
      %s17 = int_to_ptr.vmem [resolvable:$true] %s16
      %22 = dma.hbm_to_vmem [thread:$0]  %s0, 384, %s17, [#allocation3], 128, 128, 8
    $region5: #{tpu_custom_call.1} parent=1 // pred_fallthru
      _
    // Predicated region
    $region6: #{tpu_custom_call.1} parent=1 // pred_check
      _
    $region7: #{tpu_custom_call.1} parent=1 // pred_check_branch
      %24 = sbr.rel (0) target = $region9
    $region8: #{tpu_custom_call.1} parent=1 // pred_region
      %s26 = ssub.s32 768, 768
      %27 = vsyncadd [#allocation6], %s26
      %s28 = sshll.u32 [#allocation5], 4
      %s29 = int_to_ptr.vmem [resolvable:$true] %s28
      %34 = dma.hbm_to_vmem [thread:$0]  %s1, 768, %s29, [#allocation6], 128, 128, 8
    $region9: #{tpu_custom_call.1} parent=1 // pred_fallthru
      _
    // Predicated region
    $region10: #{tpu_custom_call.1} parent=1 // pred_check
      _
    $region11: #{tpu_custom_call.1} parent=1 // pred_check_branch
      %36 = sbr.rel (0) target = $region13
    $region12: #{tpu_custom_call.1} parent=1 // pred_region
      %s38 = ssub.s32 768, 768
      %39 = vsyncadd [#allocation6], %s38
      %s40 = sshll.u32 [#allocation7], 4
      %s41 = int_to_ptr.vmem [resolvable:$true] %s40
      %46 = dma.hbm_to_vmem [thread:$0]  %s2, 768, %s41, [#allocation6], 128, 128, 8
    $region13: #{tpu_custom_call.1} parent=1 // pred_fallthru
      _
    // Predicated region
    $region14: #{tpu_custom_call.1} parent=1 // pred_check
      _
    $region15: #{tpu_custom_call.1} parent=1 // pred_check_branch
      %48 = sbr.rel (0) target = $region17
    $region16: #{tpu_custom_call.1} parent=1 // pred_region
      %49 = dma.done [#allocation3], 384
    $region17: #{tpu_custom_call.1} parent=1 // pred_fallthru
      _
    // Predicated region
    $region18: #{tpu_custom_call.1} parent=1 // pred_check
      _
    $region19: #{tpu_custom_call.1} parent=1 // pred_check_branch
      %51 = sbr.rel (0) target = $region21
    $region20: #{tpu_custom_call.1} parent=1 // pred_region
      %52 = dma.done [#allocation6], 768
    $region21: #{tpu_custom_call.1} parent=1 // pred_fallthru
      _
    // Predicated region
    $region22: #{tpu_custom_call.1} parent=1 // pred_check
      _
    $region23: #{tpu_custom_call.1} parent=1 // pred_check_branch
      %54 = sbr.rel (0) target = $region25
    $region24: #{tpu_custom_call.1} parent=1 // pred_region
      %55 = dma.done [#allocation6], 768
    $region25: #{tpu_custom_call.1} parent=1 // pred_fallthru
      _
    %v56 = vld [vmem:[#allocation2] sm:$0xff]
    %v57 = vld [vmem:[#allocation2 + $0x8] sm:$0xff]
    %v58 = vld [vmem:[#allocation2 + $0x10] sm:$0xff]
    %v59 = vld [vmem:[#allocation5] sm:$0x3f]
    %v60 = vld [vmem:[#allocation5 + $0x8] sm:$0x3f]
    %v61 = vld [vmem:[#allocation5 + $0x10] sm:$0x3f]
    %v62 = vld [vmem:[#allocation5 + $0x18] sm:$0x3f]
    %v63 = vld [vmem:[#allocation5 + $0x20] sm:$0x3f]
    %v64 = vld [vmem:[#allocation5 + $0x28] sm:$0x3f]
    %v65 = vld [vmem:[#allocation7] sm:$0x3f]
    %v66 = vld [vmem:[#allocation7 + $0x8] sm:$0x3f]
    %v67 = vld [vmem:[#allocation7 + $0x10] sm:$0x3f]
    %v68 = vld [vmem:[#allocation7 + $0x18] sm:$0x3f]
    %v69 = vld [vmem:[#allocation7 + $0x20] sm:$0x3f]
    %v70 = vld [vmem:[#allocation7 + $0x28] sm:$0x3f]
    %vm71 = vcmask 64512
    %v73 = vsel %vm71, %v56, 0
    %v76 = vsel %vm71, %v59, 0
    %78 = vmatprep.subr.mxu0 0.0
    %79 = vmatpush1.xpose.msra.mxu0 %v76
    %80 = vmatprep.subr.mxu0 0.0
    %81 = vmatpush1.xpose.msra.mxu0 0.0
    %82 = vmatprep.subr.mxu0 0.0
    %83 = vmatpush1.xpose.msra.mxu0 0.0
    %84 = vmatprep.subr.mxu0 0.0
    %85 = vmatpush1.xpose.msra.mxu0 0.0
    %86 = vmatprep.subr.mxu0 0.0
    %87 = vmatpush1.xpose.msra.mxu0 0.0
    %88 = vmatprep.subr.mxu0 0.0
    %89 = vmatpush1.xpose.msra.mxu0 0.0
    %90 = vmatprep.subr.mxu0 0.0
    %91 = vmatpush1.xpose.msra.mxu0 0.0
    %92 = vmatprep.subr.mxu0 0.0
    %93 = vmatpush1.xpose.msra.mxu0 0.0
    %94 = vmatprep.subr.mxu0 0.0
    %95 = vmatpush1.xpose.msra.mxu0 0.0
    %96 = vmatprep.subr.mxu0 0.0
    %97 = vmatpush1.xpose.msra.mxu0 0.0
    %98 = vmatprep.subr.mxu0 0.0
    %99 = vmatpush1.xpose.msra.mxu0 0.0
    %100 = vmatprep.subr.mxu0 0.0
    %101 = vmatpush1.xpose.msra.mxu0 0.0
    %102 = vmatprep.subr.mxu0 0.0
    %103 = vmatpush1.xpose.msra.mxu0 0.0
    %104 = vmatprep.subr.mxu0 0.0
    %105 = vmatpush1.xpose.msra.mxu0 0.0
    %106 = vmatprep.subr.mxu0 0.0
    %107 = vmatpush1.xpose.msra.mxu0 0.0
    %108 = vmatprep.subr.mxu0 0.0
    %109 = vmatpush1.xpose.msra.mxu0 0.0
    %110 = vmatprep.subr.mxu0 0.0
    %111 = vmatpush1.xpose.msra.mxu0 0.0
    %112 = vmatprep.subr.mxu0 0.0
    %113 = vmatpush1.xpose.msra.mxu0 0.0
    %114 = vmatprep.subr.mxu0 0.0
    %115 = vmatpush1.xpose.msra.mxu0 0.0
    %116 = vmatprep.subr.mxu0 0.0
    %117 = vmatpush1.xpose.msra.mxu0 0.0
    %118 = vmatprep.subr.mxu0 0.0
    %119 = vmatpush1.xpose.msra.mxu0 0.0
    %120 = vmatprep.subr.mxu0 0.0
    %121 = vmatpush1.xpose.msra.mxu0 0.0
    %122 = vmatprep.subr.mxu0 0.0
    %123 = vmatpush1.xpose.msra.mxu0 0.0
    %124 = vmatprep.subr.mxu0 0.0
    %125 = vmatpush1.xpose.msra.mxu0 0.0
    %126 = vmatprep.subr.mxu0 0.0
    %127 = vmatpush1.xpose.msra.mxu0 0.0
    %128 = vmatprep.subr.mxu0 0.0
    %129 = vmatpush1.xpose.msra.mxu0 0.0
    %130 = vmatprep.subr.mxu0 0.0
    %131 = vmatpush1.xpose.msra.mxu0 0.0
    %132 = vmatprep.subr.mxu0 0.0
    %133 = vmatpush1.xpose.msra.mxu0 0.0
    %134 = vmatprep.subr.mxu0 0.0
    %135 = vmatpush1.xpose.msra.mxu0 0.0
    %136 = vmatprep.subr.mxu0 0.0
    %137 = vmatpush1.xpose.msra.mxu0 0.0
    %138 = vmatprep.subr.mxu0 0.0
    %139 = vmatpush1.xpose.msra.mxu0 0.0
    %140 = vmatprep.subr.mxu0 0.0
    %141 = vmatpush1.xpose.msra.mxu0 0.0
    %142 = vmatprep.mubr.f32.mxu0 0.0
    %143 = vmatmul.mubr.f32.gmra.mrb[0].mxu0 %v73
    %v144 = vpop.f32.mrb[0].mxu0
    %v145 = vadd.f32 0.0, %v144
    %v146 = vpop.f32.mrb[0].mxu0
    %147 = vdwg.mxu0
    %v149 = vsel %vm71, %v57, 0
    %v152 = vsel %vm71, %v60, 0
    %154 = vmatprep.subr.mxu0 0.0
    %155 = vmatpush1.xpose.msra.mxu0 %v152
    %156 = vmatprep.subr.mxu0 0.0
    %157 = vmatpush1.xpose.msra.mxu0 0.0
    %158 = vmatprep.subr.mxu0 0.0
    %159 = vmatpush1.xpose.msra.mxu0 0.0
    %160 = vmatprep.subr.mxu0 0.0
    %161 = vmatpush1.xpose.msra.mxu0 0.0
    %162 = vmatprep.subr.mxu0 0.0
    %163 = vmatpush1.xpose.msra.mxu0 0.0
    %164 = vmatprep.subr.mxu0 0.0
    %165 = vmatpush1.xpose.msra.mxu0 0.0
    %166 = vmatprep.subr.mxu0 0.0
    %167 = vmatpush1.xpose.msra.mxu0 0.0
    %168 = vmatprep.subr.mxu0 0.0
    %169 = vmatpush1.xpose.msra.mxu0 0.0
    %170 = vmatprep.subr.mxu0 0.0
    %171 = vmatpush1.xpose.msra.mxu0 0.0
    %172 = vmatprep.subr.mxu0 0.0
    %173 = vmatpush1.xpose.msra.mxu0 0.0
    %174 = vmatprep.subr.mxu0 0.0
    %175 = vmatpush1.xpose.msra.mxu0 0.0
    %176 = vmatprep.subr.mxu0 0.0
    %177 = vmatpush1.xpose.msra.mxu0 0.0
    %178 = vmatprep.subr.mxu0 0.0
    %179 = vmatpush1.xpose.msra.mxu0 0.0
    %180 = vmatprep.subr.mxu0 0.0
    %181 = vmatpush1.xpose.msra.mxu0 0.0
    %182 = vmatprep.subr.mxu0 0.0
    %183 = vmatpush1.xpose.msra.mxu0 0.0
    %184 = vmatprep.subr.mxu0 0.0
    %185 = vmatpush1.xpose.msra.mxu0 0.0
    %186 = vmatprep.subr.mxu0 0.0
    %187 = vmatpush1.xpose.msra.mxu0 0.0
    %188 = vmatprep.subr.mxu0 0.0
    %189 = vmatpush1.xpose.msra.mxu0 0.0
    %190 = vmatprep.subr.mxu0 0.0
    %191 = vmatpush1.xpose.msra.mxu0 0.0
    %192 = vmatprep.subr.mxu0 0.0
    %193 = vmatpush1.xpose.msra.mxu0 0.0
    %194 = vmatprep.subr.mxu0 0.0
    %195 = vmatpush1.xpose.msra.mxu0 0.0
    %196 = vmatprep.subr.mxu0 0.0
    %197 = vmatpush1.xpose.msra.mxu0 0.0
    %198 = vmatprep.subr.mxu0 0.0
    %199 = vmatpush1.xpose.msra.mxu0 0.0
    %200 = vmatprep.subr.mxu0 0.0
    %201 = vmatpush1.xpose.msra.mxu0 0.0
    %202 = vmatprep.subr.mxu0 0.0
    %203 = vmatpush1.xpose.msra.mxu0 0.0
    %204 = vmatprep.subr.mxu0 0.0
    %205 = vmatpush1.xpose.msra.mxu0 0.0
    %206 = vmatprep.subr.mxu0 0.0
    %207 = vmatpush1.xpose.msra.mxu0 0.0
    %208 = vmatprep.subr.mxu0 0.0
    %209 = vmatpush1.xpose.msra.mxu0 0.0
    %210 = vmatprep.subr.mxu0 0.0
    %211 = vmatpush1.xpose.msra.mxu0 0.0
    %212 = vmatprep.subr.mxu0 0.0
    %213 = vmatpush1.xpose.msra.mxu0 0.0
    %214 = vmatprep.subr.mxu0 0.0
    %215 = vmatpush1.xpose.msra.mxu0 0.0
    %216 = vmatprep.subr.mxu0 0.0
    %217 = vmatpush1.xpose.msra.mxu0 0.0
    %218 = vmatprep.mubr.f32.mxu0 0.0
    %219 = vmatmul.mubr.f32.gmra.mrb[0].mxu0 %v149
    %v220 = vpop.f32.mrb[0].mxu0
    %v221 = vadd.f32 0.0, %v220
    %v222 = vpop.f32.mrb[0].mxu0
    %223 = vdwg.mxu0
    %v225 = vsel %vm71, %v58, 0
    %v228 = vsel %vm71, %v61, 0
    %230 = vmatprep.subr.mxu0 0.0
    %231 = vmatpush1.xpose.msra.mxu0 %v228
    %232 = vmatprep.subr.mxu0 0.0
    %233 = vmatpush1.xpose.msra.mxu0 0.0
    %234 = vmatprep.subr.mxu0 0.0
    %235 = vmatpush1.xpose.msra.mxu0 0.0
    %236 = vmatprep.subr.mxu0 0.0
    %237 = vmatpush1.xpose.msra.mxu0 0.0
    %238 = vmatprep.subr.mxu0 0.0
    %239 = vmatpush1.xpose.msra.mxu0 0.0
    %240 = vmatprep.subr.mxu0 0.0
    %241 = vmatpush1.xpose.msra.mxu0 0.0
    %242 = vmatprep.subr.mxu0 0.0
    %243 = vmatpush1.xpose.msra.mxu0 0.0
    %244 = vmatprep.subr.mxu0 0.0
    %245 = vmatpush1.xpose.msra.mxu0 0.0
    %246 = vmatprep.subr.mxu0 0.0
    %247 = vmatpush1.xpose.msra.mxu0 0.0
    %248 = vmatprep.subr.mxu0 0.0
    %249 = vmatpush1.xpose.msra.mxu0 0.0
    %250 = vmatprep.subr.mxu0 0.0
    %251 = vmatpush1.xpose.msra.mxu0 0.0
    %252 = vmatprep.subr.mxu0 0.0
    %253 = vmatpush1.xpose.msra.mxu0 0.0
    %254 = vmatprep.subr.mxu0 0.0
    %255 = vmatpush1.xpose.msra.mxu0 0.0
    %256 = vmatprep.subr.mxu0 0.0
    %257 = vmatpush1.xpose.msra.mxu0 0.0
    %258 = vmatprep.subr.mxu0 0.0
    %259 = vmatpush1.xpose.msra.mxu0 0.0
    %260 = vmatprep.subr.mxu0 0.0
    %261 = vmatpush1.xpose.msra.mxu0 0.0
    %262 = vmatprep.subr.mxu0 0.0
    %263 = vmatpush1.xpose.msra.mxu0 0.0
    %264 = vmatprep.subr.mxu0 0.0
    %265 = vmatpush1.xpose.msra.mxu0 0.0
    %266 = vmatprep.subr.mxu0 0.0
    %267 = vmatpush1.xpose.msra.mxu0 0.0
    %268 = vmatprep.subr.mxu0 0.0
    %269 = vmatpush1.xpose.msra.mxu0 0.0
    %270 = vmatprep.subr.mxu0 0.0
    %271 = vmatpush1.xpose.msra.mxu0 0.0
    %272 = vmatprep.subr.mxu0 0.0
    %273 = vmatpush1.xpose.msra.mxu0 0.0
    %274 = vmatprep.subr.mxu0 0.0
    %275 = vmatpush1.xpose.msra.mxu0 0.0
    %276 = vmatprep.subr.mxu0 0.0
    %277 = vmatpush1.xpose.msra.mxu0 0.0
    %278 = vmatprep.subr.mxu0 0.0
    %279 = vmatpush1.xpose.msra.mxu0 0.0
    %280 = vmatprep.subr.mxu0 0.0
    %281 = vmatpush1.xpose.msra.mxu0 0.0
    %282 = vmatprep.subr.mxu0 0.0
    %283 = vmatpush1.xpose.msra.mxu0 0.0
    %284 = vmatprep.subr.mxu0 0.0
    %285 = vmatpush1.xpose.msra.mxu0 0.0
    %286 = vmatprep.subr.mxu0 0.0
    %287 = vmatpush1.xpose.msra.mxu0 0.0
    %288 = vmatprep.subr.mxu0 0.0
    %289 = vmatpush1.xpose.msra.mxu0 0.0
    %290 = vmatprep.subr.mxu0 0.0
    %291 = vmatpush1.xpose.msra.mxu0 0.0
    %292 = vmatprep.subr.mxu0 0.0
    %293 = vmatpush1.xpose.msra.mxu0 0.0
    %294 = vmatprep.mubr.f32.mxu0 0.0
    %295 = vmatmul.mubr.f32.gmra.mrb[0].mxu0 %v225
    %v296 = vpop.f32.mrb[0].mxu0
    %v297 = vadd.f32 0.0, %v296
    %v298 = vpop.f32.mrb[0].mxu0
    %299 = vdwg.mxu0
    %v301 = vsel %vm71, %v62, 0
    %303 = vmatprep.subr.mxu0 0.0
    %304 = vmatpush1.xpose.msra.mxu0 %v301
    %305 = vmatprep.subr.mxu0 0.0
    %306 = vmatpush1.xpose.msra.mxu0 0.0
    %307 = vmatprep.subr.mxu0 0.0
    %308 = vmatpush1.xpose.msra.mxu0 0.0
    %309 = vmatprep.subr.mxu0 0.0
    %310 = vmatpush1.xpose.msra.mxu0 0.0
    %311 = vmatprep.subr.mxu0 0.0
    %312 = vmatpush1.xpose.msra.mxu0 0.0
    %313 = vmatprep.subr.mxu0 0.0
    %314 = vmatpush1.xpose.msra.mxu0 0.0
    %315 = vmatprep.subr.mxu0 0.0
    %316 = vmatpush1.xpose.msra.mxu0 0.0
    %317 = vmatprep.subr.mxu0 0.0
    %318 = vmatpush1.xpose.msra.mxu0 0.0
    %319 = vmatprep.subr.mxu0 0.0
    %320 = vmatpush1.xpose.msra.mxu0 0.0
    %321 = vmatprep.subr.mxu0 0.0
    %322 = vmatpush1.xpose.msra.mxu0 0.0
    %323 = vmatprep.subr.mxu0 0.0
    %324 = vmatpush1.xpose.msra.mxu0 0.0
    %325 = vmatprep.subr.mxu0 0.0
    %326 = vmatpush1.xpose.msra.mxu0 0.0
    %327 = vmatprep.subr.mxu0 0.0
    %328 = vmatpush1.xpose.msra.mxu0 0.0
    %329 = vmatprep.subr.mxu0 0.0
    %330 = vmatpush1.xpose.msra.mxu0 0.0
    %331 = vmatprep.subr.mxu0 0.0
    %332 = vmatpush1.xpose.msra.mxu0 0.0
    %333 = vmatprep.subr.mxu0 0.0
    %334 = vmatpush1.xpose.msra.mxu0 0.0
    %335 = vmatprep.subr.mxu0 0.0
    %336 = vmatpush1.xpose.msra.mxu0 0.0
    %337 = vmatprep.subr.mxu0 0.0
    %338 = vmatpush1.xpose.msra.mxu0 0.0
    %339 = vmatprep.subr.mxu0 0.0
    %340 = vmatpush1.xpose.msra.mxu0 0.0
    %341 = vmatprep.subr.mxu0 0.0
    %342 = vmatpush1.xpose.msra.mxu0 0.0
    %343 = vmatprep.subr.mxu0 0.0
    %344 = vmatpush1.xpose.msra.mxu0 0.0
    %345 = vmatprep.subr.mxu0 0.0
    %346 = vmatpush1.xpose.msra.mxu0 0.0
    %347 = vmatprep.subr.mxu0 0.0
    %348 = vmatpush1.xpose.msra.mxu0 0.0
    %349 = vmatprep.subr.mxu0 0.0
    %350 = vmatpush1.xpose.msra.mxu0 0.0
    %351 = vmatprep.subr.mxu0 0.0
    %352 = vmatpush1.xpose.msra.mxu0 0.0
    %353 = vmatprep.subr.mxu0 0.0
    %354 = vmatpush1.xpose.msra.mxu0 0.0
    %355 = vmatprep.subr.mxu0 0.0
    %356 = vmatpush1.xpose.msra.mxu0 0.0
    %357 = vmatprep.subr.mxu0 0.0
    %358 = vmatpush1.xpose.msra.mxu0 0.0
    %359 = vmatprep.subr.mxu0 0.0
    %360 = vmatpush1.xpose.msra.mxu0 0.0
    %361 = vmatprep.subr.mxu0 0.0
    %362 = vmatpush1.xpose.msra.mxu0 0.0
    %363 = vmatprep.subr.mxu0 0.0
    %364 = vmatpush1.xpose.msra.mxu0 0.0
    %365 = vmatprep.subr.mxu0 0.0
    %366 = vmatpush1.xpose.msra.mxu0 0.0
    %367 = vmatprep.mubr.f32.mxu0 0.0
    %368 = vmatmul.mubr.f32.gmra.mrb[0].mxu0 %v73
    %v369 = vpop.f32.mrb[0].mxu0
    %v370 = vadd.f32 0.0, %v369
    %v371 = vpop.f32.mrb[0].mxu0
    %372 = vdwg.mxu0
    %v374 = vsel %vm71, %v63, 0
    %376 = vmatprep.subr.mxu0 0.0
    %377 = vmatpush1.xpose.msra.mxu0 %v374
    %378 = vmatprep.subr.mxu0 0.0
    %379 = vmatpush1.xpose.msra.mxu0 0.0
    %380 = vmatprep.subr.mxu0 0.0
    %381 = vmatpush1.xpose.msra.mxu0 0.0
    %382 = vmatprep.subr.mxu0 0.0
    %383 = vmatpush1.xpose.msra.mxu0 0.0
    %384 = vmatprep.subr.mxu0 0.0
    %385 = vmatpush1.xpose.msra.mxu0 0.0
    %386 = vmatprep.subr.mxu0 0.0
    %387 = vmatpush1.xpose.msra.mxu0 0.0
    %388 = vmatprep.subr.mxu0 0.0
    %389 = vmatpush1.xpose.msra.mxu0 0.0
    %390 = vmatprep.subr.mxu0 0.0
    %391 = vmatpush1.xpose.msra.mxu0 0.0
    %392 = vmatprep.subr.mxu0 0.0
    %393 = vmatpush1.xpose.msra.mxu0 0.0
    %394 = vmatprep.subr.mxu0 0.0
    %395 = vmatpush1.xpose.msra.mxu0 0.0
    %396 = vmatprep.subr.mxu0 0.0
    %397 = vmatpush1.xpose.msra.mxu0 0.0
    %398 = vmatprep.subr.mxu0 0.0
    %399 = vmatpush1.xpose.msra.mxu0 0.0
    %400 = vmatprep.subr.mxu0 0.0
    %401 = vmatpush1.xpose.msra.mxu0 0.0
    %402 = vmatprep.subr.mxu0 0.0
    %403 = vmatpush1.xpose.msra.mxu0 0.0
    %404 = vmatprep.subr.mxu0 0.0
    %405 = vmatpush1.xpose.msra.mxu0 0.0
    %406 = vmatprep.subr.mxu0 0.0
    %407 = vmatpush1.xpose.msra.mxu0 0.0
    %408 = vmatprep.subr.mxu0 0.0
    %409 = vmatpush1.xpose.msra.mxu0 0.0
    %410 = vmatprep.subr.mxu0 0.0
    %411 = vmatpush1.xpose.msra.mxu0 0.0
    %412 = vmatprep.subr.mxu0 0.0
    %413 = vmatpush1.xpose.msra.mxu0 0.0
    %414 = vmatprep.subr.mxu0 0.0
    %415 = vmatpush1.xpose.msra.mxu0 0.0
    %416 = vmatprep.subr.mxu0 0.0
    %417 = vmatpush1.xpose.msra.mxu0 0.0
    %418 = vmatprep.subr.mxu0 0.0
    %419 = vmatpush1.xpose.msra.mxu0 0.0
    %420 = vmatprep.subr.mxu0 0.0
    %421 = vmatpush1.xpose.msra.mxu0 0.0
    %422 = vmatprep.subr.mxu0 0.0
    %423 = vmatpush1.xpose.msra.mxu0 0.0
    %424 = vmatprep.subr.mxu0 0.0
    %425 = vmatpush1.xpose.msra.mxu0 0.0
    %426 = vmatprep.subr.mxu0 0.0
    %427 = vmatpush1.xpose.msra.mxu0 0.0
    %428 = vmatprep.subr.mxu0 0.0
    %429 = vmatpush1.xpose.msra.mxu0 0.0
    %430 = vmatprep.subr.mxu0 0.0
    %431 = vmatpush1.xpose.msra.mxu0 0.0
    %432 = vmatprep.subr.mxu0 0.0
    %433 = vmatpush1.xpose.msra.mxu0 0.0
    %434 = vmatprep.subr.mxu0 0.0
    %435 = vmatpush1.xpose.msra.mxu0 0.0
    %436 = vmatprep.subr.mxu0 0.0
    %437 = vmatpush1.xpose.msra.mxu0 0.0
    %438 = vmatprep.subr.mxu0 0.0
    %439 = vmatpush1.xpose.msra.mxu0 0.0
    %440 = vmatprep.mubr.f32.mxu0 0.0
    %441 = vmatmul.mubr.f32.gmra.mrb[0].mxu0 %v149
    %v442 = vpop.f32.mrb[0].mxu0
    %v443 = vadd.f32 0.0, %v442
    %v444 = vpop.f32.mrb[0].mxu0
    %445 = vdwg.mxu0
    %v447 = vsel %vm71, %v64, 0
    %449 = vmatprep.subr.mxu0 0.0
    %450 = vmatpush1.xpose.msra.mxu0 %v447
    %451 = vmatprep.subr.mxu0 0.0
    %452 = vmatpush1.xpose.msra.mxu0 0.0
    %453 = vmatprep.subr.mxu0 0.0
    %454 = vmatpush1.xpose.msra.mxu0 0.0
    %455 = vmatprep.subr.mxu0 0.0
    %456 = vmatpush1.xpose.msra.mxu0 0.0
    %457 = vmatprep.subr.mxu0 0.0
    %458 = vmatpush1.xpose.msra.mxu0 0.0
    %459 = vmatprep.subr.mxu0 0.0
    %460 = vmatpush1.xpose.msra.mxu0 0.0
    %461 = vmatprep.subr.mxu0 0.0
    %462 = vmatpush1.xpose.msra.mxu0 0.0
    %463 = vmatprep.subr.mxu0 0.0
    %464 = vmatpush1.xpose.msra.mxu0 0.0
    %465 = vmatprep.subr.mxu0 0.0
    %466 = vmatpush1.xpose.msra.mxu0 0.0
    %467 = vmatprep.subr.mxu0 0.0
    %468 = vmatpush1.xpose.msra.mxu0 0.0
    %469 = vmatprep.subr.mxu0 0.0
    %470 = vmatpush1.xpose.msra.mxu0 0.0
    %471 = vmatprep.subr.mxu0 0.0
    %472 = vmatpush1.xpose.msra.mxu0 0.0
    %473 = vmatprep.subr.mxu0 0.0
    %474 = vmatpush1.xpose.msra.mxu0 0.0
    %475 = vmatprep.subr.mxu0 0.0
    %476 = vmatpush1.xpose.msra.mxu0 0.0
    %477 = vmatprep.subr.mxu0 0.0
    %478 = vmatpush1.xpose.msra.mxu0 0.0
    %479 = vmatprep.subr.mxu0 0.0
    %480 = vmatpush1.xpose.msra.mxu0 0.0
    %481 = vmatprep.subr.mxu0 0.0
    %482 = vmatpush1.xpose.msra.mxu0 0.0
    %483 = vmatprep.subr.mxu0 0.0
    %484 = vmatpush1.xpose.msra.mxu0 0.0
    %485 = vmatprep.subr.mxu0 0.0
    %486 = vmatpush1.xpose.msra.mxu0 0.0
    %487 = vmatprep.subr.mxu0 0.0
    %488 = vmatpush1.xpose.msra.mxu0 0.0
    %489 = vmatprep.subr.mxu0 0.0
    %490 = vmatpush1.xpose.msra.mxu0 0.0
    %491 = vmatprep.subr.mxu0 0.0
    %492 = vmatpush1.xpose.msra.mxu0 0.0
    %493 = vmatprep.subr.mxu0 0.0
    %494 = vmatpush1.xpose.msra.mxu0 0.0
    %495 = vmatprep.subr.mxu0 0.0
    %496 = vmatpush1.xpose.msra.mxu0 0.0
    %497 = vmatprep.subr.mxu0 0.0
    %498 = vmatpush1.xpose.msra.mxu0 0.0
    %499 = vmatprep.subr.mxu0 0.0
    %500 = vmatpush1.xpose.msra.mxu0 0.0
    %501 = vmatprep.subr.mxu0 0.0
    %502 = vmatpush1.xpose.msra.mxu0 0.0
    %503 = vmatprep.subr.mxu0 0.0
    %504 = vmatpush1.xpose.msra.mxu0 0.0
    %505 = vmatprep.subr.mxu0 0.0
    %506 = vmatpush1.xpose.msra.mxu0 0.0
    %507 = vmatprep.subr.mxu0 0.0
    %508 = vmatpush1.xpose.msra.mxu0 0.0
    %509 = vmatprep.subr.mxu0 0.0
    %510 = vmatpush1.xpose.msra.mxu0 0.0
    %511 = vmatprep.subr.mxu0 0.0
    %512 = vmatpush1.xpose.msra.mxu0 0.0
    %513 = vmatprep.mubr.f32.mxu0 0.0
    %514 = vmatmul.mubr.f32.gmra.mrb[0].mxu0 %v225
    %v515 = vpop.f32.mrb[0].mxu0
    %v516 = vadd.f32 0.0, %v515
    %v517 = vpop.f32.mrb[0].mxu0
    %518 = vdwg.mxu0
    %vm519 = vcmask 48128
    %v520 = vsel %vm519, %v145, -inf
    %521 = vmax.xlane.f32.xlu0 %v520
    %v522 = vpop.xlane.xlu0 %521
    %v523 = vsel %vm519, %v221, -inf
    %524 = vmax.xlane.f32.xlu0 %v523
    %v525 = vpop.xlane.xlu0 %524
    %v526 = vsel %vm519, %v297, -inf
    %527 = vmax.xlane.f32.xlu0 %v526
    %v528 = vpop.xlane.xlu0 %527
    %v529 = vsel %vm519, %v370, -inf
    %530 = vmax.xlane.f32.xlu0 %v529
    %v531 = vpop.xlane.xlu0 %530
    %v532 = vsel %vm519, %v443, -inf
    %533 = vmax.xlane.f32.xlu0 %v532
    %v534 = vpop.xlane.xlu0 %533
    %v535 = vsel %vm519, %v516, -inf
    %536 = vmax.xlane.f32.xlu0 %v535
    %v537 = vpop.xlane.xlu0 %536
    %v538 = vsub.f32 %v145, %v522
    %v539 = vsub.f32 %v221, %v525
    %v540 = vsub.f32 %v297, %v528
    %v541 = vsub.f32 %v370, %v531
    %v542 = vsub.f32 %v443, %v534
    %v543 = vsub.f32 %v516, %v537
    %v544 = vmul.f32 %v538, 1.442695
    %v545 = vpow.pop %v544
    %v546 = vmul.f32 %v539, 1.442695
    %v547 = vpow.pop %v546
    %v548 = vmul.f32 %v540, 1.442695
    %v549 = vpow.pop %v548
    %v550 = vmul.f32 %v541, 1.442695
    %v551 = vpow.pop %v550
    %v552 = vmul.f32 %v542, 1.442695
    %v553 = vpow.pop %v552
    %v554 = vmul.f32 %v543, 1.442695
    %v555 = vpow.pop %v554
    %v556 = vsel %vm519, %v545, 0.0
    %557 = vadd.xlane.f32.xlu0 %v556
    %v558 = vpop.xlane.xlu0 %557
    %v559 = vsel %vm519, %v547, 0.0
    %560 = vadd.xlane.f32.xlu0 %v559
    %v561 = vpop.xlane.xlu0 %560
    %v562 = vsel %vm519, %v549, 0.0
    %563 = vadd.xlane.f32.xlu0 %v562
    %v564 = vpop.xlane.xlu0 %563
    %v565 = vsel %vm519, %v551, 0.0
    %566 = vadd.xlane.f32.xlu0 %v565
    %v567 = vpop.xlane.xlu0 %566
    %v568 = vsel %vm519, %v553, 0.0
    %569 = vadd.xlane.f32.xlu0 %v568
    %v570 = vpop.xlane.xlu0 %569
    %v571 = vsel %vm519, %v555, 0.0
    %572 = vadd.xlane.f32.xlu0 %v571
    %v573 = vpop.xlane.xlu0 %572
    %v575 = vsel %vm519, %v545, 0
    %vm577 = vcmask 1045504
    %v579 = vsel %vm577, %v65, 0
    %581 = vmatprep.subr.mxu0 0.0
    %582 = vmatpush1.msra.mxu0 %v579
    %583 = vmatprep.subr.mxu0 0.0
    %584 = vmatpush1.msra.mxu0 0.0
    %585 = vmatprep.subr.mxu0 0.0
    %586 = vmatpush1.msra.mxu0 0.0
    %587 = vmatprep.subr.mxu0 0.0
    %588 = vmatpush1.msra.mxu0 0.0
    %589 = vmatprep.subr.mxu0 0.0
    %590 = vmatpush1.msra.mxu0 0.0
    %591 = vmatprep.subr.mxu0 0.0
    %592 = vmatpush1.msra.mxu0 0.0
    %593 = vmatprep.subr.mxu0 0.0
    %594 = vmatpush1.msra.mxu0 0.0
    %595 = vmatprep.subr.mxu0 0.0
    %596 = vmatpush1.msra.mxu0 0.0
    %597 = vmatprep.subr.mxu0 0.0
    %598 = vmatpush1.msra.mxu0 0.0
    %599 = vmatprep.subr.mxu0 0.0
    %600 = vmatpush1.msra.mxu0 0.0
    %601 = vmatprep.subr.mxu0 0.0
    %602 = vmatpush1.msra.mxu0 0.0
    %603 = vmatprep.subr.mxu0 0.0
    %604 = vmatpush1.msra.mxu0 0.0
    %605 = vmatprep.subr.mxu0 0.0
    %606 = vmatpush1.msra.mxu0 0.0
    %607 = vmatprep.subr.mxu0 0.0
    %608 = vmatpush1.msra.mxu0 0.0
    %609 = vmatprep.subr.mxu0 0.0
    %610 = vmatpush1.msra.mxu0 0.0
    %611 = vmatprep.subr.mxu0 0.0
    %612 = vmatpush1.msra.mxu0 0.0
    %613 = vmatprep.subr.mxu0 0.0
    %614 = vmatpush1.msra.mxu0 0.0
    %615 = vmatprep.subr.mxu0 0.0
    %616 = vmatpush1.msra.mxu0 0.0
    %617 = vmatprep.subr.mxu0 0.0
    %618 = vmatpush1.msra.mxu0 0.0
    %619 = vmatprep.subr.mxu0 0.0
    %620 = vmatpush1.msra.mxu0 0.0
    %621 = vmatprep.subr.mxu0 0.0
    %622 = vmatpush1.msra.mxu0 0.0
    %623 = vmatprep.subr.mxu0 0.0
    %624 = vmatpush1.msra.mxu0 0.0
    %625 = vmatprep.subr.mxu0 0.0
    %626 = vmatpush1.msra.mxu0 0.0
    %627 = vmatprep.subr.mxu0 0.0
    %628 = vmatpush1.msra.mxu0 0.0
    %629 = vmatprep.subr.mxu0 0.0
    %630 = vmatpush1.msra.mxu0 0.0
    %631 = vmatprep.subr.mxu0 0.0
    %632 = vmatpush1.msra.mxu0 0.0
    %633 = vmatprep.subr.mxu0 0.0
    %634 = vmatpush1.msra.mxu0 0.0
    %635 = vmatprep.subr.mxu0 0.0
    %636 = vmatpush1.msra.mxu0 0.0
    %637 = vmatprep.subr.mxu0 0.0
    %638 = vmatpush1.msra.mxu0 0.0
    %639 = vmatprep.subr.mxu0 0.0
    %640 = vmatpush1.msra.mxu0 0.0
    %641 = vmatprep.subr.mxu0 0.0
    %642 = vmatpush1.msra.mxu0 0.0
    %643 = vmatprep.subr.mxu0 0.0
    %644 = vmatpush1.msra.mxu0 0.0
    %645 = vmatprep.mubr.f32.mxu0 0.0
    %646 = vmatmul.mubr.f32.gmra.mrb[0].mxu0 %v575
    %v647 = vpop.f32.mrb[0].mxu0
    %v648 = vadd.f32 0.0, %v647
    %v649 = vpop.f32.mrb[0].mxu0
    %650 = vdwg.mxu0
    %v652 = vsel %vm519, %v547, 0
    %v655 = vsel %vm577, %v66, 0
    %657 = vmatprep.subr.mxu0 0.0
    %658 = vmatpush1.msra.mxu0 %v655
    %659 = vmatprep.subr.mxu0 0.0
    %660 = vmatpush1.msra.mxu0 0.0
    %661 = vmatprep.subr.mxu0 0.0
    %662 = vmatpush1.msra.mxu0 0.0
    %663 = vmatprep.subr.mxu0 0.0
    %664 = vmatpush1.msra.mxu0 0.0
    %665 = vmatprep.subr.mxu0 0.0
    %666 = vmatpush1.msra.mxu0 0.0
    %667 = vmatprep.subr.mxu0 0.0
    %668 = vmatpush1.msra.mxu0 0.0
    %669 = vmatprep.subr.mxu0 0.0
    %670 = vmatpush1.msra.mxu0 0.0
    %671 = vmatprep.subr.mxu0 0.0
    %672 = vmatpush1.msra.mxu0 0.0
    %673 = vmatprep.subr.mxu0 0.0
    %674 = vmatpush1.msra.mxu0 0.0
    %675 = vmatprep.subr.mxu0 0.0
    %676 = vmatpush1.msra.mxu0 0.0
    %677 = vmatprep.subr.mxu0 0.0
    %678 = vmatpush1.msra.mxu0 0.0
    %679 = vmatprep.subr.mxu0 0.0
    %680 = vmatpush1.msra.mxu0 0.0
    %681 = vmatprep.subr.mxu0 0.0
    %682 = vmatpush1.msra.mxu0 0.0
    %683 = vmatprep.subr.mxu0 0.0
    %684 = vmatpush1.msra.mxu0 0.0
    %685 = vmatprep.subr.mxu0 0.0
    %686 = vmatpush1.msra.mxu0 0.0
    %687 = vmatprep.subr.mxu0 0.0
    %688 = vmatpush1.msra.mxu0 0.0
    %689 = vmatprep.subr.mxu0 0.0
    %690 = vmatpush1.msra.mxu0 0.0
    %691 = vmatprep.subr.mxu0 0.0
    %692 = vmatpush1.msra.mxu0 0.0
    %693 = vmatprep.subr.mxu0 0.0
    %694 = vmatpush1.msra.mxu0 0.0
    %695 = vmatprep.subr.mxu0 0.0
    %696 = vmatpush1.msra.mxu0 0.0
    %697 = vmatprep.subr.mxu0 0.0
    %698 = vmatpush1.msra.mxu0 0.0
    %699 = vmatprep.subr.mxu0 0.0
    %700 = vmatpush1.msra.mxu0 0.0
    %701 = vmatprep.subr.mxu0 0.0
    %702 = vmatpush1.msra.mxu0 0.0
    %703 = vmatprep.subr.mxu0 0.0
    %704 = vmatpush1.msra.mxu0 0.0
    %705 = vmatprep.subr.mxu0 0.0
    %706 = vmatpush1.msra.mxu0 0.0
    %707 = vmatprep.subr.mxu0 0.0
    %708 = vmatpush1.msra.mxu0 0.0
    %709 = vmatprep.subr.mxu0 0.0
    %710 = vmatpush1.msra.mxu0 0.0
    %711 = vmatprep.subr.mxu0 0.0
    %712 = vmatpush1.msra.mxu0 0.0
    %713 = vmatprep.subr.mxu0 0.0
    %714 = vmatpush1.msra.mxu0 0.0
    %715 = vmatprep.subr.mxu0 0.0
    %716 = vmatpush1.msra.mxu0 0.0
    %717 = vmatprep.subr.mxu0 0.0
    %718 = vmatpush1.msra.mxu0 0.0
    %719 = vmatprep.subr.mxu0 0.0
    %720 = vmatpush1.msra.mxu0 0.0
    %721 = vmatprep.mubr.f32.mxu0 0.0
    %722 = vmatmul.mubr.f32.gmra.mrb[0].mxu0 %v652
    %v723 = vpop.f32.mrb[0].mxu0
    %v724 = vadd.f32 0.0, %v723
    %v725 = vpop.f32.mrb[0].mxu0
    %726 = vdwg.mxu0
    %v728 = vsel %vm519, %v549, 0
    %v731 = vsel %vm577, %v67, 0
    %733 = vmatprep.subr.mxu0 0.0
    %734 = vmatpush1.msra.mxu0 %v731
    %735 = vmatprep.subr.mxu0 0.0
    %736 = vmatpush1.msra.mxu0 0.0
    %737 = vmatprep.subr.mxu0 0.0
    %738 = vmatpush1.msra.mxu0 0.0
    %739 = vmatprep.subr.mxu0 0.0
    %740 = vmatpush1.msra.mxu0 0.0
    %741 = vmatprep.subr.mxu0 0.0
    %742 = vmatpush1.msra.mxu0 0.0
    %743 = vmatprep.subr.mxu0 0.0
    %744 = vmatpush1.msra.mxu0 0.0
    %745 = vmatprep.subr.mxu0 0.0
    %746 = vmatpush1.msra.mxu0 0.0
    %747 = vmatprep.subr.mxu0 0.0
    %748 = vmatpush1.msra.mxu0 0.0
    %749 = vmatprep.subr.mxu0 0.0
    %750 = vmatpush1.msra.mxu0 0.0
    %751 = vmatprep.subr.mxu0 0.0
    %752 = vmatpush1.msra.mxu0 0.0
    %753 = vmatprep.subr.mxu0 0.0
    %754 = vmatpush1.msra.mxu0 0.0
    %755 = vmatprep.subr.mxu0 0.0
    %756 = vmatpush1.msra.mxu0 0.0
    %757 = vmatprep.subr.mxu0 0.0
    %758 = vmatpush1.msra.mxu0 0.0
    %759 = vmatprep.subr.mxu0 0.0
    %760 = vmatpush1.msra.mxu0 0.0
    %761 = vmatprep.subr.mxu0 0.0
    %762 = vmatpush1.msra.mxu0 0.0
    %763 = vmatprep.subr.mxu0 0.0
    %764 = vmatpush1.msra.mxu0 0.0
    %765 = vmatprep.subr.mxu0 0.0
    %766 = vmatpush1.msra.mxu0 0.0
    %767 = vmatprep.subr.mxu0 0.0
    %768 = vmatpush1.msra.mxu0 0.0
    %769 = vmatprep.subr.mxu0 0.0
    %770 = vmatpush1.msra.mxu0 0.0
    %771 = vmatprep.subr.mxu0 0.0
    %772 = vmatpush1.msra.mxu0 0.0
    %773 = vmatprep.subr.mxu0 0.0
    %774 = vmatpush1.msra.mxu0 0.0
    %775 = vmatprep.subr.mxu0 0.0
    %776 = vmatpush1.msra.mxu0 0.0
    %777 = vmatprep.subr.mxu0 0.0
    %778 = vmatpush1.msra.mxu0 0.0
    %779 = vmatprep.subr.mxu0 0.0
    %780 = vmatpush1.msra.mxu0 0.0
    %781 = vmatprep.subr.mxu0 0.0
    %782 = vmatpush1.msra.mxu0 0.0
    %783 = vmatprep.subr.mxu0 0.0
    %784 = vmatpush1.msra.mxu0 0.0
    %785 = vmatprep.subr.mxu0 0.0
    %786 = vmatpush1.msra.mxu0 0.0
    %787 = vmatprep.subr.mxu0 0.0
    %788 = vmatpush1.msra.mxu0 0.0
    %789 = vmatprep.subr.mxu0 0.0
    %790 = vmatpush1.msra.mxu0 0.0
    %791 = vmatprep.subr.mxu0 0.0
    %792 = vmatpush1.msra.mxu0 0.0
    %793 = vmatprep.subr.mxu0 0.0
    %794 = vmatpush1.msra.mxu0 0.0
    %795 = vmatprep.subr.mxu0 0.0
    %796 = vmatpush1.msra.mxu0 0.0
    %797 = vmatprep.mubr.f32.mxu0 0.0
    %798 = vmatmul.mubr.f32.gmra.mrb[0].mxu0 %v728
    %v799 = vpop.f32.mrb[0].mxu0
    %v800 = vadd.f32 0.0, %v799
    %v801 = vpop.f32.mrb[0].mxu0
    %802 = vdwg.mxu0
    %v804 = vsel %vm519, %v551, 0
    %v807 = vsel %vm577, %v68, 0
    %809 = vmatprep.subr.mxu0 0.0
    %810 = vmatpush1.msra.mxu0 %v807
    %811 = vmatprep.subr.mxu0 0.0
    %812 = vmatpush1.msra.mxu0 0.0
    %813 = vmatprep.subr.mxu0 0.0
    %814 = vmatpush1.msra.mxu0 0.0
    %815 = vmatprep.subr.mxu0 0.0
    %816 = vmatpush1.msra.mxu0 0.0
    %817 = vmatprep.subr.mxu0 0.0
    %818 = vmatpush1.msra.mxu0 0.0
    %819 = vmatprep.subr.mxu0 0.0
    %820 = vmatpush1.msra.mxu0 0.0
    %821 = vmatprep.subr.mxu0 0.0
    %822 = vmatpush1.msra.mxu0 0.0
    %823 = vmatprep.subr.mxu0 0.0
    %824 = vmatpush1.msra.mxu0 0.0
    %825 = vmatprep.subr.mxu0 0.0
    %826 = vmatpush1.msra.mxu0 0.0
    %827 = vmatprep.subr.mxu0 0.0
    %828 = vmatpush1.msra.mxu0 0.0
    %829 = vmatprep.subr.mxu0 0.0
    %830 = vmatpush1.msra.mxu0 0.0
    %831 = vmatprep.subr.mxu0 0.0
    %832 = vmatpush1.msra.mxu0 0.0
    %833 = vmatprep.subr.mxu0 0.0
    %834 = vmatpush1.msra.mxu0 0.0
    %835 = vmatprep.subr.mxu0 0.0
    %836 = vmatpush1.msra.mxu0 0.0
    %837 = vmatprep.subr.mxu0 0.0
    %838 = vmatpush1.msra.mxu0 0.0
    %839 = vmatprep.subr.mxu0 0.0
    %840 = vmatpush1.msra.mxu0 0.0
    %841 = vmatprep.subr.mxu0 0.0
    %842 = vmatpush1.msra.mxu0 0.0
    %843 = vmatprep.subr.mxu0 0.0
    %844 = vmatpush1.msra.mxu0 0.0
    %845 = vmatprep.subr.mxu0 0.0
    %846 = vmatpush1.msra.mxu0 0.0
    %847 = vmatprep.subr.mxu0 0.0
    %848 = vmatpush1.msra.mxu0 0.0
    %849 = vmatprep.subr.mxu0 0.0
    %850 = vmatpush1.msra.mxu0 0.0
    %851 = vmatprep.subr.mxu0 0.0
    %852 = vmatpush1.msra.mxu0 0.0
    %853 = vmatprep.subr.mxu0 0.0
    %854 = vmatpush1.msra.mxu0 0.0
    %855 = vmatprep.subr.mxu0 0.0
    %856 = vmatpush1.msra.mxu0 0.0
    %857 = vmatprep.subr.mxu0 0.0
    %858 = vmatpush1.msra.mxu0 0.0
    %859 = vmatprep.subr.mxu0 0.0
    %860 = vmatpush1.msra.mxu0 0.0
    %861 = vmatprep.subr.mxu0 0.0
    %862 = vmatpush1.msra.mxu0 0.0
    %863 = vmatprep.subr.mxu0 0.0
    %864 = vmatpush1.msra.mxu0 0.0
    %865 = vmatprep.subr.mxu0 0.0
    %866 = vmatpush1.msra.mxu0 0.0
    %867 = vmatprep.subr.mxu0 0.0
    %868 = vmatpush1.msra.mxu0 0.0
    %869 = vmatprep.subr.mxu0 0.0
    %870 = vmatpush1.msra.mxu0 0.0
    %871 = vmatprep.subr.mxu0 0.0
    %872 = vmatpush1.msra.mxu0 0.0
    %873 = vmatprep.mubr.f32.mxu0 0.0
    %874 = vmatmul.mubr.f32.gmra.mrb[0].mxu0 %v804
    %v875 = vpop.f32.mrb[0].mxu0
    %v876 = vadd.f32 0.0, %v875
    %v877 = vpop.f32.mrb[0].mxu0
    %878 = vdwg.mxu0
    %v880 = vsel %vm519, %v553, 0
    %v883 = vsel %vm577, %v69, 0
    %885 = vmatprep.subr.mxu0 0.0
    %886 = vmatpush1.msra.mxu0 %v883
    %887 = vmatprep.subr.mxu0 0.0
    %888 = vmatpush1.msra.mxu0 0.0
    %889 = vmatprep.subr.mxu0 0.0
    %890 = vmatpush1.msra.mxu0 0.0
    %891 = vmatprep.subr.mxu0 0.0
    %892 = vmatpush1.msra.mxu0 0.0
    %893 = vmatprep.subr.mxu0 0.0
    %894 = vmatpush1.msra.mxu0 0.0
    %895 = vmatprep.subr.mxu0 0.0
    %896 = vmatpush1.msra.mxu0 0.0
    %897 = vmatprep.subr.mxu0 0.0
    %898 = vmatpush1.msra.mxu0 0.0
    %899 = vmatprep.subr.mxu0 0.0
    %900 = vmatpush1.msra.mxu0 0.0
    %901 = vmatprep.subr.mxu0 0.0
    %902 = vmatpush1.msra.mxu0 0.0
    %903 = vmatprep.subr.mxu0 0.0
    %904 = vmatpush1.msra.mxu0 0.0
    %905 = vmatprep.subr.mxu0 0.0
    %906 = vmatpush1.msra.mxu0 0.0
    %907 = vmatprep.subr.mxu0 0.0
    %908 = vmatpush1.msra.mxu0 0.0
    %909 = vmatprep.subr.mxu0 0.0
    %910 = vmatpush1.msra.mxu0 0.0
    %911 = vmatprep.subr.mxu0 0.0
    %912 = vmatpush1.msra.mxu0 0.0
    %913 = vmatprep.subr.mxu0 0.0
    %914 = vmatpush1.msra.mxu0 0.0
    %915 = vmatprep.subr.mxu0 0.0
    %916 = vmatpush1.msra.mxu0 0.0
    %917 = vmatprep.subr.mxu0 0.0
    %918 = vmatpush1.msra.mxu0 0.0
    %919 = vmatprep.subr.mxu0 0.0
    %920 = vmatpush1.msra.mxu0 0.0
    %921 = vmatprep.subr.mxu0 0.0
    %922 = vmatpush1.msra.mxu0 0.0
    %923 = vmatprep.subr.mxu0 0.0
    %924 = vmatpush1.msra.mxu0 0.0
    %925 = vmatprep.subr.mxu0 0.0
    %926 = vmatpush1.msra.mxu0 0.0
    %927 = vmatprep.subr.mxu0 0.0
    %928 = vmatpush1.msra.mxu0 0.0
    %929 = vmatprep.subr.mxu0 0.0
    %930 = vmatpush1.msra.mxu0 0.0
    %931 = vmatprep.subr.mxu0 0.0
    %932 = vmatpush1.msra.mxu0 0.0
    %933 = vmatprep.subr.mxu0 0.0
    %934 = vmatpush1.msra.mxu0 0.0
    %935 = vmatprep.subr.mxu0 0.0
    %936 = vmatpush1.msra.mxu0 0.0
    %937 = vmatprep.subr.mxu0 0.0
    %938 = vmatpush1.msra.mxu0 0.0
    %939 = vmatprep.subr.mxu0 0.0
    %940 = vmatpush1.msra.mxu0 0.0
    %941 = vmatprep.subr.mxu0 0.0
    %942 = vmatpush1.msra.mxu0 0.0
    %943 = vmatprep.subr.mxu0 0.0
    %944 = vmatpush1.msra.mxu0 0.0
    %945 = vmatprep.subr.mxu0 0.0
    %946 = vmatpush1.msra.mxu0 0.0
    %947 = vmatprep.subr.mxu0 0.0
    %948 = vmatpush1.msra.mxu0 0.0
    %949 = vmatprep.mubr.f32.mxu0 0.0
    %950 = vmatmul.mubr.f32.gmra.mrb[0].mxu0 %v880
    %v951 = vpop.f32.mrb[0].mxu0
    %v952 = vadd.f32 0.0, %v951
    %v953 = vpop.f32.mrb[0].mxu0
    %954 = vdwg.mxu0
    %v956 = vsel %vm519, %v555, 0
    %v959 = vsel %vm577, %v70, 0
    %961 = vmatprep.subr.mxu0 0.0
    %962 = vmatpush1.msra.mxu0 %v959
    %963 = vmatprep.subr.mxu0 0.0
    %964 = vmatpush1.msra.mxu0 0.0
    %965 = vmatprep.subr.mxu0 0.0
    %966 = vmatpush1.msra.mxu0 0.0
    %967 = vmatprep.subr.mxu0 0.0
    %968 = vmatpush1.msra.mxu0 0.0
    %969 = vmatprep.subr.mxu0 0.0
    %970 = vmatpush1.msra.mxu0 0.0
    %971 = vmatprep.subr.mxu0 0.0
    %972 = vmatpush1.msra.mxu0 0.0
    %973 = vmatprep.subr.mxu0 0.0
    %974 = vmatpush1.msra.mxu0 0.0
    %975 = vmatprep.subr.mxu0 0.0
    %976 = vmatpush1.msra.mxu0 0.0
    %977 = vmatprep.subr.mxu0 0.0
    %978 = vmatpush1.msra.mxu0 0.0
    %979 = vmatprep.subr.mxu0 0.0
    %980 = vmatpush1.msra.mxu0 0.0
    %981 = vmatprep.subr.mxu0 0.0
    %982 = vmatpush1.msra.mxu0 0.0
    %983 = vmatprep.subr.mxu0 0.0
    %984 = vmatpush1.msra.mxu0 0.0
    %985 = vmatprep.subr.mxu0 0.0
    %986 = vmatpush1.msra.mxu0 0.0
    %987 = vmatprep.subr.mxu0 0.0
    %988 = vmatpush1.msra.mxu0 0.0
    %989 = vmatprep.subr.mxu0 0.0
    %990 = vmatpush1.msra.mxu0 0.0
    %991 = vmatprep.subr.mxu0 0.0
    %992 = vmatpush1.msra.mxu0 0.0
    %993 = vmatprep.subr.mxu0 0.0
    %994 = vmatpush1.msra.mxu0 0.0
    %995 = vmatprep.subr.mxu0 0.0
    %996 = vmatpush1.msra.mxu0 0.0
    %997 = vmatprep.subr.mxu0 0.0
    %998 = vmatpush1.msra.mxu0 0.0
    %999 = vmatprep.subr.mxu0 0.0
    %1000 = vmatpush1.msra.mxu0 0.0
    %1001 = vmatprep.subr.mxu0 0.0
    %1002 = vmatpush1.msra.mxu0 0.0
    %1003 = vmatprep.subr.mxu0 0.0
    %1004 = vmatpush1.msra.mxu0 0.0
    %1005 = vmatprep.subr.mxu0 0.0
    %1006 = vmatpush1.msra.mxu0 0.0
    %1007 = vmatprep.subr.mxu0 0.0
    %1008 = vmatpush1.msra.mxu0 0.0
    %1009 = vmatprep.subr.mxu0 0.0
    %1010 = vmatpush1.msra.mxu0 0.0
    %1011 = vmatprep.subr.mxu0 0.0
    %1012 = vmatpush1.msra.mxu0 0.0
    %1013 = vmatprep.subr.mxu0 0.0
    %1014 = vmatpush1.msra.mxu0 0.0
    %1015 = vmatprep.subr.mxu0 0.0
    %1016 = vmatpush1.msra.mxu0 0.0
    %1017 = vmatprep.subr.mxu0 0.0
    %1018 = vmatpush1.msra.mxu0 0.0
    %1019 = vmatprep.subr.mxu0 0.0
    %1020 = vmatpush1.msra.mxu0 0.0
    %1021 = vmatprep.subr.mxu0 0.0
    %1022 = vmatpush1.msra.mxu0 0.0
    %1023 = vmatprep.subr.mxu0 0.0
    %1024 = vmatpush1.msra.mxu0 0.0
    %1025 = vmatprep.mubr.f32.mxu0 0.0
    %1026 = vmatmul.mubr.f32.gmra.mrb[0].mxu0 %v956
    %v1027 = vpop.f32.mrb[0].mxu0
    %v1028 = vadd.f32 0.0, %v1027
    %v1029 = vpop.f32.mrb[0].mxu0
    %1030 = vdwg.mxu0
    %v1031 = vrcp.pop %v558
    %v1032 = vrcp.pop %v561
    %v1033 = vrcp.pop %v564
    %v1034 = vrcp.pop %v567
    %v1035 = vrcp.pop %v570
    %v1036 = vrcp.pop %v573
    %v1037 = vmul.f32 %v648, %v1031
    %v1038 = vmul.f32 %v724, %v1032
    %v1039 = vmul.f32 %v800, %v1033
    %v1040 = vmul.f32 %v876, %v1034
    %v1041 = vmul.f32 %v952, %v1035
    %v1042 = vmul.f32 %v1028, %v1036
    %1043 = vst.msk [vmem:[#allocation8] sm:$0xff] %vm519, %v1037
    %1044 = vst.msk [vmem:[#allocation8 + $0x8] sm:$0xff] %vm519, %v1038
    %1045 = vst.msk [vmem:[#allocation8 + $0x10] sm:$0xff] %vm519, %v1039
    %1046 = vst.msk [vmem:[#allocation8 + $0x18] sm:$0xff] %vm519, %v1040
    %1047 = vst.msk [vmem:[#allocation8 + $0x20] sm:$0xff] %vm519, %v1041
    %1048 = vst.msk [vmem:[#allocation8 + $0x28] sm:$0xff] %vm519, %v1042
    // Predicated region
    $region26: #{tpu_custom_call.1} parent=1 // pred_check
      _
    $region27: #{tpu_custom_call.1} parent=1 // pred_check_branch
      %1050 = sbr.rel (0) target = $region29
    $region28: #{tpu_custom_call.1} parent=1 // pred_region
      %s1052 = ssub.s32 768, 768
      %1053 = vsyncadd [#allocation4], %s1052
      %s1054 = sshll.u32 [#allocation8], 4
      %s1055 = int_to_ptr.vmem [resolvable:$true] %s1054
      %1060 = dma.vmem_to_hbm [thread:$0]  %s1055, 768, %s3, [#allocation4], 128, 128, 8
    $region29: #{tpu_custom_call.1} parent=1 // pred_fallthru
      _
    // Predicated region
    $region30: #{tpu_custom_call.1} parent=1 // pred_check
      _
    $region31: #{tpu_custom_call.1} parent=1 // pred_check_branch
      %1062 = sbr.rel (0) target = $region33
    $region32: #{tpu_custom_call.1} parent=1 // pred_region
      %1063 = dma.done [#allocation4], 768
    $region33: #{tpu_custom_call.1} parent=1 // pred_fallthru
      _
    %1064 = vsyncpa [#allocation3], 1
    %1065 = vsyncpa [#allocation6], 1
    %1066 = vsyncpa [#allocation4], 1

</llo_original>
